<compile_context>
chip_gen: v7x
topology: tpu7x:2x2x1
jax: 0.10.0
libtpu: 0.0.40
codegen_flags: <defaults>
</compile_context>

<pallas_src>
import jax
import jax.numpy as jnp
from jax.experimental import pallas as pl
from jax.experimental.pallas import tpu as pltpu


# ---------------- fused kernel ----------------

def sgc_fused_kernel(a_ref, x_ref, w1_ref, b1_ref, w2_ref, b2_ref, o_ref):
    """out = relu(A @ (A @ (X @ W1)) + b1) @ W2_pad + b2_pad, all VMEM-resident.

    Every matmul runs with bf16 operands and f32 MXU accumulation; bias adds and
    ReLU are done in f32. Intermediates never leave VMEM.
    """
    # Pass 0: feature transform  XW1 = X @ W1         (N, F) @ (F, H) -> (N, H)
    xw1 = jnp.dot(
        x_ref[...], w1_ref[...], preferred_element_type=jnp.float32
    ).astype(jnp.bfloat16)

    # Pass 1: first hop          H1 = A @ XW1          (N, N) @ (N, H) -> (N, H)
    h1 = jnp.dot(
        a_ref[...], xw1, preferred_element_type=jnp.float32
    ).astype(jnp.bfloat16)

    # Pass 2: second hop         H2 = A @ H1           (N, N) @ (N, H) -> (N, H)
    h2 = jnp.dot(a_ref[...], h1, preferred_element_type=jnp.float32)

    # Bias + ReLU in f32.
    h = jnp.maximum(h2 + b1_ref[...], 0.0)

    # Classifier: bf16 operands, f32 accumulation, f32 bias add. Lane-dense (N,128).
    out = jnp.dot(
        h.astype(jnp.bfloat16), w2_ref[...], preferred_element_type=jnp.float32
    ) + b2_ref[...]
    o_ref[...] = out


# ---------------- wrapper ----------------

def sgc_forward(a_hat, x, w1, b1, w2, b2):
    """Fused SGC forward: relu(A_hat^2 @ X @ W1 + b1) @ W2 + b2."""
    N, F = x.shape
    H = w1.shape[1]
    C = w2.shape[1]
    CP = 128  # lane-dense padded output width

    # bf16 MXU operands (f32 accumulation happens inside the kernel).
    # For a cached graph, cast A (and X/W1) once outside the per-step forward.
    a_bf = a_hat.astype(jnp.bfloat16)
    x_bf = x.astype(jnp.bfloat16)
    w1_bf = w1.astype(jnp.bfloat16)

    # Lane-dense classifier: pad to 128 output lanes (zeros), slice afterwards.
    # w2 padded in bf16 (classifier matmul runs on bf16 operands), b2 stays f32.
    w2_pad = jnp.zeros((H, CP), jnp.bfloat16).at[:, :C].set(w2.astype(jnp.bfloat16))
    b2_pad = jnp.zeros((1, CP), jnp.float32).at[:, :C].set(b2)

    def full_spec(shape):
        return pl.BlockSpec(shape, lambda i: (0, 0))

    out_pad = pl.pallas_call(
        sgc_fused_kernel,
        out_shape=jax.ShapeDtypeStruct((N, CP), jnp.float32),
        grid=(1,),
        in_specs=[
            full_spec((N, N)),    # A_hat (bf16)
            full_spec((N, F)),    # X     (bf16)
            full_spec((F, H)),    # W1    (bf16)
            full_spec((1, H)),    # b1    (f32)
            full_spec((H, CP)),   # W2pad (bf16)
            full_spec((1, CP)),   # b2pad (f32)
        ],
        out_specs=full_spec((N, CP)),
        compiler_params=pltpu.CompilerParams(
            dimension_semantics=("arbitrary",)),
    )(a_bf, x_bf, w1_bf, b1, w2_pad, b2_pad)

    return out_pad[:, :C]


# ---------------- input construction ----------------

def build_normalized_adj(key, n_nodes):
    """Random undirected graph + self-loops, symmetric D^{-1/2} A D^{-1/2}
    normalization (matches DGL SGConv 'both' norm)."""
    upper = jax.random.bernoulli(key, p=0.1, shape=(n_nodes, n_nodes)).astype(jnp.float32)
    adj = jnp.triu(upper, k=1)
    adj = adj + adj.T
    adj = adj + jnp.eye(n_nodes, dtype=jnp.float32)        # self-loops
    deg = jnp.sum(adj, axis=1)
    d_inv_sqrt = 1.0 / jnp.sqrt(jnp.maximum(deg, 1.0))
    a_hat = d_inv_sqrt[:, None] * adj * d_inv_sqrt[None, :]
    return a_hat


if __name__ == "__main__":
    # Small, deterministic problem sizes.
    N_NODES = 256
    IN_FEATS = 32
    N_HIDDEN = 32
    N_CLASSES = 8

    key = jax.random.PRNGKey(0)
    k_adj, k_x, k_w1, k_b1, k_w2, k_b2 = jax.random.split(key, 6)

    a_hat = build_normalized_adj(k_adj, N_NODES)
    x = jax.random.normal(k_x, (N_NODES, IN_FEATS), dtype=jnp.float32)

    # Deterministic parameter init (uniform, PyTorch-Linear-like scale)
    w1 = jax.random.uniform(k_w1, (IN_FEATS, N_HIDDEN), jnp.float32,
                            minval=-1.0, maxval=1.0) / jnp.sqrt(IN_FEATS)
    b1 = (jax.random.uniform(k_b1, (1, N_HIDDEN), jnp.float32,
                             minval=-1.0, maxval=1.0) / jnp.sqrt(IN_FEATS))
    w2 = jax.random.uniform(k_w2, (N_HIDDEN, N_CLASSES), jnp.float32,
                            minval=-1.0, maxval=1.0) / jnp.sqrt(N_HIDDEN)
    b2 = (jax.random.uniform(k_b2, (1, N_CLASSES), jnp.float32,
                             minval=-1.0, maxval=1.0) / jnp.sqrt(N_HIDDEN))

    out = sgc_forward(a_hat, x, w1, b1, w2, b2)
    out = jax.block_until_ready(out)

    # Pure-JAX reference mirroring the kernel's bf16-operand / f32-accumulate chain.
    bf = lambda t: t.astype(jnp.bfloat16).astype(jnp.float32)
    xw1_ref = bf(bf(x) @ bf(w1))                 # bf16-stored pass-0 result
    h1_ref = bf(bf(a_hat) @ xw1_ref)             # bf16-stored pass-1 result
    h2_ref = bf(a_hat) @ h1_ref                  # f32 pass-2 result
    h_ref = jnp.maximum(h2_ref + b1, 0.0)        # bias + ReLU in f32
    out_ref = bf(h_ref) @ bf(w2) + b2            # bf16-operand classifier + f32 bias

    assert out.shape == (N_NODES, N_CLASSES)
    assert jnp.allclose(out, out_ref, atol=1e-2, rtol=1e-2)

    print("KERNEL_OK")
</pallas_src>

<mosaic_0001>
module attributes {stable_mosaic.version = 11 : i64} {
  func.func @sgc_fused_kernel(%arg0: i32, %arg1: memref<256x256xbf16, #tpu.memory_space<vmem>>, %arg2: memref<256x32xbf16, #tpu.memory_space<vmem>>, %arg3: memref<32x32xbf16, #tpu.memory_space<vmem>>, %arg4: memref<1x32xf32, #tpu.memory_space<vmem>>, %arg5: memref<32x128xbf16, #tpu.memory_space<vmem>>, %arg6: memref<1x128xf32, #tpu.memory_space<vmem>>, %arg7: memref<256x128xf32, #tpu.memory_space<vmem>>) attributes {dimension_semantics = [#tpu.dimension_semantics<arbitrary>], iteration_bounds = array<i64: 1>, scalar_prefetch = 0 : i64, scratch_operands = 0 : i64, tpu.core_type = #tpu.core_type<tc>, window_params = [{pipeline_mode = #tpu.pipeline_mode<synchronous>, transform_indices = @transform_0, window_bounds = array<i64: 256, 256>}, {pipeline_mode = #tpu.pipeline_mode<synchronous>, transform_indices = @transform_1, window_bounds = array<i64: 256, 32>}, {pipeline_mode = #tpu.pipeline_mode<synchronous>, transform_indices = @transform_2, window_bounds = array<i64: 32, 32>}, {pipeline_mode = #tpu.pipeline_mode<synchronous>, transform_indices = @transform_3, window_bounds = array<i64: 1, 32>}, {pipeline_mode = #tpu.pipeline_mode<synchronous>, transform_indices = @transform_4, window_bounds = array<i64: 32, 128>}, {pipeline_mode = #tpu.pipeline_mode<synchronous>, transform_indices = @transform_5, window_bounds = array<i64: 1, 128>}, {pipeline_mode = #tpu.pipeline_mode<synchronous>, transform_indices = @transform_6, window_bounds = array<i64: 256, 128>}]} {
    %c0 = arith.constant 0 : index
    %c0_0 = arith.constant 0 : index
    %0 = vector.load %arg2[%c0, %c0_0] : memref<256x32xbf16, #tpu.memory_space<vmem>>, vector<256x32xbf16>
    %c0_1 = arith.constant 0 : index
    %c0_2 = arith.constant 0 : index
    %1 = vector.load %arg3[%c0_1, %c0_2] : memref<32x32xbf16, #tpu.memory_space<vmem>>, vector<32x32xbf16>
    %cst = arith.constant dense<0.000000e+00> : vector<256x32xf32>
    %2 = tpu.matmul %0, %1, %cst {dimension_numbers = #tpu.dot_dimension_numbers<[1], [0], [0], [1], [0, 0, 1, 1], [], []>} : vector<256x32xbf16>, vector<32x32xbf16>, vector<256x32xf32> -> vector<256x32xf32>
    %3 = arith.truncf %2 : vector<256x32xf32> to vector<256x32xbf16>
    %c0_3 = arith.constant 0 : index
    %c0_4 = arith.constant 0 : index
    %4 = vector.load %arg1[%c0_3, %c0_4] : memref<256x256xbf16, #tpu.memory_space<vmem>>, vector<256x256xbf16>
    %cst_5 = arith.constant dense<0.000000e+00> : vector<256x32xf32>
    %5 = tpu.matmul %4, %3, %cst_5 {dimension_numbers = #tpu.dot_dimension_numbers<[1], [0], [0], [1], [0, 0, 1, 1], [], []>} : vector<256x256xbf16>, vector<256x32xbf16>, vector<256x32xf32> -> vector<256x32xf32>
    %6 = arith.truncf %5 : vector<256x32xf32> to vector<256x32xbf16>
    %c0_6 = arith.constant 0 : index
    %c0_7 = arith.constant 0 : index
    %7 = vector.load %arg1[%c0_6, %c0_7] : memref<256x256xbf16, #tpu.memory_space<vmem>>, vector<256x256xbf16>
    %cst_8 = arith.constant dense<0.000000e+00> : vector<256x32xf32>
    %8 = tpu.matmul %7, %6, %cst_8 {dimension_numbers = #tpu.dot_dimension_numbers<[1], [0], [0], [1], [0, 0, 1, 1], [], []>} : vector<256x256xbf16>, vector<256x32xbf16>, vector<256x32xf32> -> vector<256x32xf32>
    %c0_9 = arith.constant 0 : index
    %c0_10 = arith.constant 0 : index
    %9 = vector.load %arg4[%c0_9, %c0_10] : memref<1x32xf32, #tpu.memory_space<vmem>>, vector<1x32xf32>
    %10 = vector.broadcast %9 : vector<1x32xf32> to vector<256x32xf32>
    %11 = arith.addf %8, %10 : vector<256x32xf32>
    %cst_11 = arith.constant 0.000000e+00 : f32
    %12 = vector.broadcast %cst_11 : f32 to vector<256x32xf32>
    %13 = arith.maximumf %11, %12 : vector<256x32xf32>
    %14 = arith.truncf %13 : vector<256x32xf32> to vector<256x32xbf16>
    %c0_12 = arith.constant 0 : index
    %c0_13 = arith.constant 0 : index
    %15 = vector.load %arg5[%c0_12, %c0_13] : memref<32x128xbf16, #tpu.memory_space<vmem>>, vector<32x128xbf16>
    %cst_14 = arith.constant dense<0.000000e+00> : vector<256x128xf32>
    %16 = tpu.matmul %14, %15, %cst_14 {dimension_numbers = #tpu.dot_dimension_numbers<[1], [0], [0], [1], [0, 0, 1, 1], [], []>} : vector<256x32xbf16>, vector<32x128xbf16>, vector<256x128xf32> -> vector<256x128xf32>
    %c0_15 = arith.constant 0 : index
    %c0_16 = arith.constant 0 : index
    %17 = vector.load %arg6[%c0_15, %c0_16] : memref<1x128xf32, #tpu.memory_space<vmem>>, vector<1x128xf32>
    %18 = vector.broadcast %17 : vector<1x128xf32> to vector<256x128xf32>
    %19 = arith.addf %16, %18 : vector<256x128xf32>
    %c0_17 = arith.constant 0 : index
    %c0_18 = arith.constant 0 : index
    %20 = vector.load %arg7[%c0_17, %c0_18] : memref<256x128xf32, #tpu.memory_space<vmem>>, vector<256x128xf32>
    tpu.vector_store %arg7[%c0_17, %c0_18], %19 {strides = array<i32>} : memref<256x128xf32, #tpu.memory_space<vmem>>, vector<256x128xf32>,
    return
  }
  func.func @transform_0(%arg0: i32) -> (i32, i32) {
    %c0_i32 = arith.constant 0 : i32
    %c0_i32_0 = arith.constant 0 : i32
    %c0_i32_1 = arith.constant 0 : i32
    return %c0_i32, %c0_i32_0 : i32, i32
  }
  func.func @transform_1(%arg0: i32) -> (i32, i32) {
    %c0_i32 = arith.constant 0 : i32
    %c0_i32_0 = arith.constant 0 : i32
    %c0_i32_1 = arith.constant 0 : i32
    return %c0_i32, %c0_i32_0 : i32, i32
  }
  func.func @transform_2(%arg0: i32) -> (i32, i32) {
    %c0_i32 = arith.constant 0 : i32
    %c0_i32_0 = arith.constant 0 : i32
    %c0_i32_1 = arith.constant 0 : i32
    return %c0_i32, %c0_i32_0 : i32, i32
  }
  func.func @transform_3(%arg0: i32) -> (i32, i32) {
    %c0_i32 = arith.constant 0 : i32
    %c0_i32_0 = arith.constant 0 : i32
    %c0_i32_1 = arith.constant 0 : i32
    return %c0_i32, %c0_i32_0 : i32, i32
  }
  func.func @transform_4(%arg0: i32) -> (i32, i32) {
    %c0_i32 = arith.constant 0 : i32
    %c0_i32_0 = arith.constant 0 : i32
    %c0_i32_1 = arith.constant 0 : i32
    return %c0_i32, %c0_i32_0 : i32, i32
  }
  func.func @transform_5(%arg0: i32) -> (i32, i32) {
    %c0_i32 = arith.constant 0 : i32
    %c0_i32_0 = arith.constant 0 : i32
    %c0_i32_1 = arith.constant 0 : i32
    return %c0_i32, %c0_i32_0 : i32, i32
  }
  func.func @transform_6(%arg0: i32) -> (i32, i32) {
    %c0_i32 = arith.constant 0 : i32
    %c0_i32_0 = arith.constant 0 : i32
    %c0_i32_1 = arith.constant 0 : i32
    return %c0_i32, %c0_i32_0 : i32, i32
  }
}

</mosaic_0001>

<llo_original>
// kernel: tpu_custom_call.1
$region0: #{tpu_custom_call.1}
  #allocation0 [shape = 'u32[]', space=smem, size = 0x4, offset = 0x4, fixed_abs, tag = 'smem constant byte address 0x4 - core index']
  #allocation1 [shape = 'u32[144,128]{1,0:T(1,128)}', space=vmem, size = 0x12000, scoped, tag = 'internal scratch']
  %s0 = inlined_call_operand.hbm [shape: bf16[256,256], index: 0, kind: input, shape index: {}]
  %s1 = inlined_call_operand.vmem [shape: bf16[256,32], index: 1, kind: input, shape index: {}]
  %s2 = inlined_call_operand.vmem [shape: bf16[32,32], index: 2, kind: input, shape index: {}]
  %s3 = inlined_call_operand.vmem [shape: f32[1,32], index: 3, kind: input, shape index: {}]
  %s4 = inlined_call_operand.vmem [shape: bf16[32,128], index: 4, kind: input, shape index: {}]
  %s5 = inlined_call_operand.vmem [shape: f32[1,128], index: 5, kind: input, shape index: {}]
  %s6 = inlined_call_operand.hbm [shape: f32[256,128], index: 6, kind: output, shape index: {}]
  %s7 = sld [smem:[#allocation0]]
  $region38: #{tpu_custom_call.1} parent=0
    _
  %s9 = ssub.s32 1, %s7
  %s10 = scalar_select 0, %s9, %s7
  $region1: #{tpu_custom_call.1} parent=0
    #allocation2 [shape = 'u8[131072]{0}', space=vmem, size = 0x20000, scoped, tag = 'input window, operand 0, single buffered']
    #allocation3 [shape = 's32[1]{0}', space=sflag, size = 0x4, scoped, tag = 'scoped memory for tpu_custom_call.1']
    #allocation4 [shape = 's32[1]{0}', space=sflag, size = 0x4, scoped, tag = 'scoped memory for tpu_custom_call.1']
    #allocation5 [shape = 'u8[131072]{0}', space=vmem, size = 0x20000, scoped, tag = 'output window, operand 0, single buffered']
    %11 = vsyncpa [#allocation3], 0
    %12 = vsyncpa [#allocation4], 0
    // Predicated region
    $region2: #{tpu_custom_call.1} parent=1 // pred_check
      _
    $region3: #{tpu_custom_call.1} parent=1 // pred_check_branch
      %14 = sbr.rel (0) target = $region5
    $region4: #{tpu_custom_call.1} parent=1 // pred_region
      %s16 = ssub.s32 4096, 4096
      %17 = vsyncadd [#allocation3], %s16
      %s18 = sshll.u32 [#allocation2], 4
      %s19 = int_to_ptr.vmem [resolvable:$true] %s18
      %24 = dma.hbm_to_vmem [thread:$0]  %s0, 4096, %s19, [#allocation3], 128, 128, 8
    $region5: #{tpu_custom_call.1} parent=1 // pred_fallthru
      _
    // Predicated region
    $region6: #{tpu_custom_call.1} parent=1 // pred_check
      _
    $region7: #{tpu_custom_call.1} parent=1 // pred_check_branch
      %26 = sbr.rel (0) target = $region9
    $region8: #{tpu_custom_call.1} parent=1 // pred_region
      _
    $region9: #{tpu_custom_call.1} parent=1 // pred_fallthru
      _
    // Predicated region
    $region10: #{tpu_custom_call.1} parent=1 // pred_check
      _
    $region11: #{tpu_custom_call.1} parent=1 // pred_check_branch
      %28 = sbr.rel (0) target = $region13
    $region12: #{tpu_custom_call.1} parent=1 // pred_region
      _
    $region13: #{tpu_custom_call.1} parent=1 // pred_fallthru
      _
    // Predicated region
    $region14: #{tpu_custom_call.1} parent=1 // pred_check
      _
    $region15: #{tpu_custom_call.1} parent=1 // pred_check_branch
      %30 = sbr.rel (0) target = $region17
    $region16: #{tpu_custom_call.1} parent=1 // pred_region
      _
    $region17: #{tpu_custom_call.1} parent=1 // pred_fallthru
      _
    // Predicated region
    $region18: #{tpu_custom_call.1} parent=1 // pred_check
      _
    $region19: #{tpu_custom_call.1} parent=1 // pred_check_branch
      %32 = sbr.rel (0) target = $region21
    $region20: #{tpu_custom_call.1} parent=1 // pred_region
      _
    $region21: #{tpu_custom_call.1} parent=1 // pred_fallthru
      _
    // Predicated region
    $region22: #{tpu_custom_call.1} parent=1 // pred_check
      _
    $region23: #{tpu_custom_call.1} parent=1 // pred_check_branch
      %34 = sbr.rel (0) target = $region25
    $region24: #{tpu_custom_call.1} parent=1 // pred_region
      _
    $region25: #{tpu_custom_call.1} parent=1 // pred_fallthru
      _
    // Predicated region
    $region26: #{tpu_custom_call.1} parent=1 // pred_check
      _
    $region27: #{tpu_custom_call.1} parent=1 // pred_check_branch
      %36 = sbr.rel (0) target = $region29
    $region28: #{tpu_custom_call.1} parent=1 // pred_region
      %37 = dma.done [#allocation3], 4096
    $region29: #{tpu_custom_call.1} parent=1 // pred_fallthru
      _
    %v39 = vld [vmem:[%s1] sm:$0xf]
    %v40 = vld [vmem:[%s1 + $0x4] sm:$0xf]
    %v41 = vld [vmem:[%s1 + $0x8] sm:$0xf]
    %v42 = vld [vmem:[%s1 + $0xc] sm:$0xf]
    %v43 = vld [vmem:[%s1 + $0x10] sm:$0xf]
    %v44 = vld [vmem:[%s1 + $0x14] sm:$0xf]
    %v45 = vld [vmem:[%s1 + $0x18] sm:$0xf]
    %v46 = vld [vmem:[%s1 + $0x1c] sm:$0xf]
    %v47 = vld [vmem:[%s1 + $0x20] sm:$0xf]
    %v48 = vld [vmem:[%s1 + $0x24] sm:$0xf]
    %v49 = vld [vmem:[%s1 + $0x28] sm:$0xf]
    %v50 = vld [vmem:[%s1 + $0x2c] sm:$0xf]
    %v51 = vld [vmem:[%s1 + $0x30] sm:$0xf]
    %v52 = vld [vmem:[%s1 + $0x34] sm:$0xf]
    %v53 = vld [vmem:[%s1 + $0x38] sm:$0xf]
    %v54 = vld [vmem:[%s1 + $0x3c] sm:$0xf]
    %v55 = vld [vmem:[%s1 + $0x40] sm:$0xf]
    %v56 = vld [vmem:[%s1 + $0x44] sm:$0xf]
    %v57 = vld [vmem:[%s1 + $0x48] sm:$0xf]
    %v58 = vld [vmem:[%s1 + $0x4c] sm:$0xf]
    %v59 = vld [vmem:[%s1 + $0x50] sm:$0xf]
    %v60 = vld [vmem:[%s1 + $0x54] sm:$0xf]
    %v61 = vld [vmem:[%s1 + $0x58] sm:$0xf]
    %v62 = vld [vmem:[%s1 + $0x5c] sm:$0xf]
    %v63 = vld [vmem:[%s1 + $0x60] sm:$0xf]
    %v64 = vld [vmem:[%s1 + $0x64] sm:$0xf]
    %v65 = vld [vmem:[%s1 + $0x68] sm:$0xf]
    %v66 = vld [vmem:[%s1 + $0x6c] sm:$0xf]
    %v67 = vld [vmem:[%s1 + $0x70] sm:$0xf]
    %v68 = vld [vmem:[%s1 + $0x74] sm:$0xf]
    %v69 = vld [vmem:[%s1 + $0x78] sm:$0xf]
    %v70 = vld [vmem:[%s1 + $0x7c] sm:$0xf]
    %v71 = vld [vmem:[%s2] sm:$0xf]
    %v72 = vld [vmem:[%s2 + $0x4] sm:$0xf]
    %v73 = vld [vmem:[%s2 + $0x8] sm:$0xf]
    %v74 = vld [vmem:[%s2 + $0xc] sm:$0xf]
    %v107 = vunpack.c.l.b16 %v39
    %v108 = vunpack.c.l.b16 %v40
    %v109 = vunpack.c.l.b16 %v41
    %v110 = vunpack.c.l.b16 %v42
    %v111 = vunpack.c.l.b16 %v43
    %v112 = vunpack.c.l.b16 %v44
    %v113 = vunpack.c.l.b16 %v45
    %v114 = vunpack.c.l.b16 %v46
    %v115 = vunpack.c.l.b16 %v47
    %v116 = vunpack.c.l.b16 %v48
    %v117 = vunpack.c.l.b16 %v49
    %v118 = vunpack.c.l.b16 %v50
    %v119 = vunpack.c.l.b16 %v51
    %v120 = vunpack.c.l.b16 %v52
    %v121 = vunpack.c.l.b16 %v53
    %v122 = vunpack.c.l.b16 %v54
    %v123 = vunpack.c.l.b16 %v55
    %v124 = vunpack.c.l.b16 %v56
    %v125 = vunpack.c.l.b16 %v57
    %v126 = vunpack.c.l.b16 %v58
    %v127 = vunpack.c.l.b16 %v59
    %v128 = vunpack.c.l.b16 %v60
    %v129 = vunpack.c.l.b16 %v61
    %v130 = vunpack.c.l.b16 %v62
    %v131 = vunpack.c.l.b16 %v63
    %v132 = vunpack.c.l.b16 %v64
    %v133 = vunpack.c.l.b16 %v65
    %v134 = vunpack.c.l.b16 %v66
    %v135 = vunpack.c.l.b16 %v67
    %v136 = vunpack.c.l.b16 %v68
    %v137 = vunpack.c.l.b16 %v69
    %v138 = vunpack.c.l.b16 %v70
    %v139 = vpack.c.b16 %v108, %v107
    %v140 = vpack.c.b16 %v110, %v109
    %v141 = vpack.c.b16 %v112, %v111
    %v142 = vpack.c.b16 %v114, %v113
    %v143 = vpack.c.b16 %v116, %v115
    %v144 = vpack.c.b16 %v118, %v117
    %v145 = vpack.c.b16 %v120, %v119
    %v146 = vpack.c.b16 %v122, %v121
    %v147 = vpack.c.b16 %v124, %v123
    %v148 = vpack.c.b16 %v126, %v125
    %v149 = vpack.c.b16 %v128, %v127
    %v150 = vpack.c.b16 %v130, %v129
    %v151 = vpack.c.b16 %v132, %v131
    %v152 = vpack.c.b16 %v134, %v133
    %v153 = vpack.c.b16 %v136, %v135
    %v154 = vpack.c.b16 %v138, %v137
    %v159 = vunpack.c.l.b16 %v71
    %v160 = vunpack.c.l.b16 %v72
    %v161 = vunpack.c.l.b16 %v73
    %v162 = vunpack.c.l.b16 %v74
    %v163 = vpack.c.b16 %v160, %v159
    %v164 = vpack.c.b16 %v162, %v161
    %vm167 = vcmask 261120
    %v169 = vsel %vm167, %v139, 0
    %v172 = vsel %vm167, %v140, 0
    %v175 = vsel %vm167, %v141, 0
    %v178 = vsel %vm167, %v142, 0
    %v181 = vsel %vm167, %v143, 0
    %v184 = vsel %vm167, %v144, 0
    %v187 = vsel %vm167, %v145, 0
    %v190 = vsel %vm167, %v146, 0
    %v193 = vsel %vm167, %v147, 0
    %v196 = vsel %vm167, %v148, 0
    %v199 = vsel %vm167, %v149, 0
    %v202 = vsel %vm167, %v150, 0
    %v205 = vsel %vm167, %v151, 0
    %v208 = vsel %vm167, %v152, 0
    %v211 = vsel %vm167, %v153, 0
    %v214 = vsel %vm167, %v154, 0
    %216 = vmatprep.subr.bf16.mxu0 0
    %217 = vmatpush1.bf16.msra.mxu0 %v163
    %218 = vmatprep.subr.bf16.mxu0 0
    %219 = vmatpush1.bf16.msra.mxu0 %v164
    %220 = vmatprep.subr.bf16.mxu0 0
    %221 = vmatpush1.bf16.msra.mxu0 0
    %222 = vmatprep.subr.bf16.mxu0 0
    %223 = vmatpush1.bf16.msra.mxu0 0
    %224 = vmatprep.subr.bf16.mxu0 0
    %225 = vmatpush1.bf16.msra.mxu0 0
    %226 = vmatprep.subr.bf16.mxu0 0
    %227 = vmatpush1.bf16.msra.mxu0 0
    %228 = vmatprep.subr.bf16.mxu0 0
    %229 = vmatpush1.bf16.msra.mxu0 0
    %230 = vmatprep.subr.bf16.mxu0 0
    %231 = vmatpush1.bf16.msra.mxu0 0
    %232 = vmatprep.subr.bf16.mxu0 0
    %233 = vmatpush1.bf16.msra.mxu0 0
    %234 = vmatprep.subr.bf16.mxu0 0
    %235 = vmatpush1.bf16.msra.mxu0 0
    %236 = vmatprep.subr.bf16.mxu0 0
    %237 = vmatpush1.bf16.msra.mxu0 0
    %238 = vmatprep.subr.bf16.mxu0 0
    %239 = vmatpush1.bf16.msra.mxu0 0
    %240 = vmatprep.subr.bf16.mxu0 0
    %241 = vmatpush1.bf16.msra.mxu0 0
    %242 = vmatprep.subr.bf16.mxu0 0
    %243 = vmatpush1.bf16.msra.mxu0 0
    %244 = vmatprep.subr.bf16.mxu0 0
    %245 = vmatpush1.bf16.msra.mxu0 0
    %246 = vmatprep.subr.bf16.mxu0 0
    %247 = vmatpush1.bf16.msra.mxu0 0
    %248 = vmatprep.mubr.bf16.mxu0 0
    %249 = vmatmul.mubr.bf16.gmra.mrb[0].mxu0 %v169
    %v250 = vpop.f32.mrb[0].mxu0
    %v251 = vadd.f32 0.0, %v250
    %v252 = vpop.f32.mrb[0].mxu0
    %v253 = vpop.f32.mrb[0].mxu0
    %v254 = vadd.f32 0.0, %v253
    %v255 = vpop.f32.mrb[0].mxu0
    %256 = vmatprep.mubr.bf16.mxu0 0
    %257 = vmatmul.mubr.bf16.gmra.mrb[0].mxu0 %v172
    %v258 = vpop.f32.mrb[0].mxu0
    %v259 = vadd.f32 0.0, %v258
    %v260 = vpop.f32.mrb[0].mxu0
    %v261 = vpop.f32.mrb[0].mxu0
    %v262 = vadd.f32 0.0, %v261
    %v263 = vpop.f32.mrb[0].mxu0
    %264 = vmatprep.mubr.bf16.mxu0 0
    %265 = vmatmul.mubr.bf16.gmra.mrb[0].mxu0 %v175
    %v266 = vpop.f32.mrb[0].mxu0
    %v267 = vadd.f32 0.0, %v266
    %v268 = vpop.f32.mrb[0].mxu0
    %v269 = vpop.f32.mrb[0].mxu0
    %v270 = vadd.f32 0.0, %v269
    %v271 = vpop.f32.mrb[0].mxu0
    %272 = vmatprep.mubr.bf16.mxu0 0
    %273 = vmatmul.mubr.bf16.gmra.mrb[0].mxu0 %v178
    %v274 = vpop.f32.mrb[0].mxu0
    %v275 = vadd.f32 0.0, %v274
    %v276 = vpop.f32.mrb[0].mxu0
    %v277 = vpop.f32.mrb[0].mxu0
    %v278 = vadd.f32 0.0, %v277
    %v279 = vpop.f32.mrb[0].mxu0
    %280 = vmatprep.mubr.bf16.mxu0 0
    %281 = vmatmul.mubr.bf16.gmra.mrb[0].mxu0 %v181
    %v282 = vpop.f32.mrb[0].mxu0
    %v283 = vadd.f32 0.0, %v282
    %v284 = vpop.f32.mrb[0].mxu0
    %v285 = vpop.f32.mrb[0].mxu0
    %v286 = vadd.f32 0.0, %v285
    %v287 = vpop.f32.mrb[0].mxu0
    %288 = vmatprep.mubr.bf16.mxu0 0
    %289 = vmatmul.mubr.bf16.gmra.mrb[0].mxu0 %v184
    %v290 = vpop.f32.mrb[0].mxu0
    %v291 = vadd.f32 0.0, %v290
    %v292 = vpop.f32.mrb[0].mxu0
    %v293 = vpop.f32.mrb[0].mxu0
    %v294 = vadd.f32 0.0, %v293
    %v295 = vpop.f32.mrb[0].mxu0
    %296 = vmatprep.mubr.bf16.mxu0 0
    %297 = vmatmul.mubr.bf16.gmra.mrb[0].mxu0 %v187
    %v298 = vpop.f32.mrb[0].mxu0
    %v299 = vadd.f32 0.0, %v298
    %v300 = vpop.f32.mrb[0].mxu0
    %v301 = vpop.f32.mrb[0].mxu0
    %v302 = vadd.f32 0.0, %v301
    %v303 = vpop.f32.mrb[0].mxu0
    %304 = vmatprep.mubr.bf16.mxu0 0
    %305 = vmatmul.mubr.bf16.gmra.mrb[0].mxu0 %v190
    %v306 = vpop.f32.mrb[0].mxu0
    %v307 = vadd.f32 0.0, %v306
    %v308 = vpop.f32.mrb[0].mxu0
    %v309 = vpop.f32.mrb[0].mxu0
    %v310 = vadd.f32 0.0, %v309
    %v311 = vpop.f32.mrb[0].mxu0
    %312 = vmatprep.mubr.bf16.mxu0 0
    %313 = vmatmul.mubr.bf16.gmra.mrb[0].mxu0 %v193
    %v314 = vpop.f32.mrb[0].mxu0
    %v315 = vadd.f32 0.0, %v314
    %v316 = vpop.f32.mrb[0].mxu0
    %v317 = vpop.f32.mrb[0].mxu0
    %v318 = vadd.f32 0.0, %v317
    %v319 = vpop.f32.mrb[0].mxu0
    %320 = vmatprep.mubr.bf16.mxu0 0
    %321 = vmatmul.mubr.bf16.gmra.mrb[0].mxu0 %v196
    %v322 = vpop.f32.mrb[0].mxu0
    %v323 = vadd.f32 0.0, %v322
    %v324 = vpop.f32.mrb[0].mxu0
    %v325 = vpop.f32.mrb[0].mxu0
    %v326 = vadd.f32 0.0, %v325
    %v327 = vpop.f32.mrb[0].mxu0
    %328 = vmatprep.mubr.bf16.mxu0 0
    %329 = vmatmul.mubr.bf16.gmra.mrb[0].mxu0 %v199
    %v330 = vpop.f32.mrb[0].mxu0
    %v331 = vadd.f32 0.0, %v330
    %v332 = vpop.f32.mrb[0].mxu0
    %v333 = vpop.f32.mrb[0].mxu0
    %v334 = vadd.f32 0.0, %v333
    %v335 = vpop.f32.mrb[0].mxu0
    %336 = vmatprep.mubr.bf16.mxu0 0
    %337 = vmatmul.mubr.bf16.gmra.mrb[0].mxu0 %v202
    %v338 = vpop.f32.mrb[0].mxu0
    %v339 = vadd.f32 0.0, %v338
    %v340 = vpop.f32.mrb[0].mxu0
    %v341 = vpop.f32.mrb[0].mxu0
    %v342 = vadd.f32 0.0, %v341
    %v343 = vpop.f32.mrb[0].mxu0
    %344 = vmatprep.mubr.bf16.mxu0 0
    %345 = vmatmul.mubr.bf16.gmra.mrb[0].mxu0 %v205
    %v346 = vpop.f32.mrb[0].mxu0
    %v347 = vadd.f32 0.0, %v346
    %v348 = vpop.f32.mrb[0].mxu0
    %v349 = vpop.f32.mrb[0].mxu0
    %v350 = vadd.f32 0.0, %v349
    %v351 = vpop.f32.mrb[0].mxu0
    %352 = vmatprep.mubr.bf16.mxu0 0
    %353 = vmatmul.mubr.bf16.gmra.mrb[0].mxu0 %v208
    %v354 = vpop.f32.mrb[0].mxu0
    %v355 = vadd.f32 0.0, %v354
    %v356 = vpop.f32.mrb[0].mxu0
    %v357 = vpop.f32.mrb[0].mxu0
    %v358 = vadd.f32 0.0, %v357
    %v359 = vpop.f32.mrb[0].mxu0
    %360 = vmatprep.mubr.bf16.mxu0 0
    %361 = vmatmul.mubr.bf16.gmra.mrb[0].mxu0 %v211
    %v362 = vpop.f32.mrb[0].mxu0
    %v363 = vadd.f32 0.0, %v362
    %v364 = vpop.f32.mrb[0].mxu0
    %v365 = vpop.f32.mrb[0].mxu0
    %v366 = vadd.f32 0.0, %v365
    %v367 = vpop.f32.mrb[0].mxu0
    %368 = vmatprep.mubr.bf16.mxu0 0
    %369 = vmatmul.mubr.bf16.gmra.mrb[0].mxu0 %v214
    %v370 = vpop.f32.mrb[0].mxu0
    %v371 = vadd.f32 0.0, %v370
    %v372 = vpop.f32.mrb[0].mxu0
    %v373 = vpop.f32.mrb[0].mxu0
    %v374 = vadd.f32 0.0, %v373
    %v375 = vpop.f32.mrb[0].mxu0
    %376 = vdwg.mxu0
    %v377 = vpack.c.bf16 %v254, %v251
    %v378 = vpack.c.bf16 %v262, %v259
    %v379 = vpack.c.bf16 %v270, %v267
    %v380 = vpack.c.bf16 %v278, %v275
    %v381 = vpack.c.bf16 %v286, %v283
    %v382 = vpack.c.bf16 %v294, %v291
    %v383 = vpack.c.bf16 %v302, %v299
    %v384 = vpack.c.bf16 %v310, %v307
    %v385 = vpack.c.bf16 %v318, %v315
    %v386 = vpack.c.bf16 %v326, %v323
    %v387 = vpack.c.bf16 %v334, %v331
    %v388 = vpack.c.bf16 %v342, %v339
    %v389 = vpack.c.bf16 %v350, %v347
    %v390 = vpack.c.bf16 %v358, %v355
    %v391 = vpack.c.bf16 %v366, %v363
    %v392 = vpack.c.bf16 %v374, %v371
    %v393 = vld [vmem:[#allocation2] sm:$0xff]
    %v394 = vld [vmem:[#allocation2 + $0x8] sm:$0xff]
    %v395 = vld [vmem:[#allocation2 + $0x10] sm:$0xff]
    %v396 = vld [vmem:[#allocation2 + $0x18] sm:$0xff]
    %v397 = vld [vmem:[#allocation2 + $0x20] sm:$0xff]
    %v398 = vld [vmem:[#allocation2 + $0x28] sm:$0xff]
    %v399 = vld [vmem:[#allocation2 + $0x30] sm:$0xff]
    %v400 = vld [vmem:[#allocation2 + $0x38] sm:$0xff]
    %v401 = vld [vmem:[#allocation2 + $0x40] sm:$0xff]
    %v402 = vld [vmem:[#allocation2 + $0x48] sm:$0xff]
    %v403 = vld [vmem:[#allocation2 + $0x50] sm:$0xff]
    %v404 = vld [vmem:[#allocation2 + $0x58] sm:$0xff]
    %v405 = vld [vmem:[#allocation2 + $0x60] sm:$0xff]
    %v406 = vld [vmem:[#allocation2 + $0x68] sm:$0xff]
    %v407 = vld [vmem:[#allocation2 + $0x70] sm:$0xff]
    %v408 = vld [vmem:[#allocation2 + $0x78] sm:$0xff]
    %v409 = vld [vmem:[#allocation2 + $0x80] sm:$0xff]
    %v410 = vld [vmem:[#allocation2 + $0x88] sm:$0xff]
    %v411 = vld [vmem:[#allocation2 + $0x90] sm:$0xff]
    %v412 = vld [vmem:[#allocation2 + $0x98] sm:$0xff]
    %v413 = vld [vmem:[#allocation2 + $0xa0] sm:$0xff]
    %v414 = vld [vmem:[#allocation2 + $0xa8] sm:$0xff]
    %v415 = vld [vmem:[#allocation2 + $0xb0] sm:$0xff]
    %v416 = vld [vmem:[#allocation2 + $0xb8] sm:$0xff]
    %v417 = vld [vmem:[#allocation2 + $0xc0] sm:$0xff]
    %v418 = vld [vmem:[#allocation2 + $0xc8] sm:$0xff]
    %v419 = vld [vmem:[#allocation2 + $0xd0] sm:$0xff]
    %v420 = vld [vmem:[#allocation2 + $0xd8] sm:$0xff]
    %v421 = vld [vmem:[#allocation2 + $0xe0] sm:$0xff]
    %v422 = vld [vmem:[#allocation2 + $0xe8] sm:$0xff]
    %v423 = vld [vmem:[#allocation2 + $0xf0] sm:$0xff]
    %v424 = vld [vmem:[#allocation2 + $0xf8] sm:$0xff]
    %v457 = vunpack.c.l.b16 %v393
    %v458 = vunpack.c.h.b16 %v393
    %v459 = vunpack.c.l.b16 %v394
    %v460 = vunpack.c.h.b16 %v394
    %v461 = vunpack.c.l.b16 %v395
    %v462 = vunpack.c.h.b16 %v395
    %v463 = vunpack.c.l.b16 %v396
    %v464 = vunpack.c.h.b16 %v396
    %v465 = vunpack.c.l.b16 %v397
    %v466 = vunpack.c.h.b16 %v397
    %v467 = vunpack.c.l.b16 %v398
    %v468 = vunpack.c.h.b16 %v398
    %v469 = vunpack.c.l.b16 %v399
    %v470 = vunpack.c.h.b16 %v399
    %v471 = vunpack.c.l.b16 %v400
    %v472 = vunpack.c.h.b16 %v400
    %v473 = vunpack.c.l.b16 %v401
    %v474 = vunpack.c.h.b16 %v401
    %v475 = vunpack.c.l.b16 %v402
    %v476 = vunpack.c.h.b16 %v402
    %v477 = vunpack.c.l.b16 %v403
    %v478 = vunpack.c.h.b16 %v403
    %v479 = vunpack.c.l.b16 %v404
    %v480 = vunpack.c.h.b16 %v404
    %v481 = vunpack.c.l.b16 %v405
    %v482 = vunpack.c.h.b16 %v405
    %v483 = vunpack.c.l.b16 %v406
    %v484 = vunpack.c.h.b16 %v406
    %v485 = vunpack.c.l.b16 %v407
    %v486 = vunpack.c.h.b16 %v407
    %v487 = vunpack.c.l.b16 %v408
    %v488 = vunpack.c.h.b16 %v408
    %v489 = vunpack.c.l.b16 %v409
    %v490 = vunpack.c.h.b16 %v409
    %v491 = vunpack.c.l.b16 %v410
    %v492 = vunpack.c.h.b16 %v410
    %v493 = vunpack.c.l.b16 %v411
    %v494 = vunpack.c.h.b16 %v411
    %v495 = vunpack.c.l.b16 %v412
    %v496 = vunpack.c.h.b16 %v412
    %v497 = vunpack.c.l.b16 %v413
    %v498 = vunpack.c.h.b16 %v413
    %v499 = vunpack.c.l.b16 %v414
    %v500 = vunpack.c.h.b16 %v414
    %v501 = vunpack.c.l.b16 %v415
    %v502 = vunpack.c.h.b16 %v415
    %v503 = vunpack.c.l.b16 %v416
    %v504 = vunpack.c.h.b16 %v416
    %v505 = vunpack.c.l.b16 %v417
    %v506 = vunpack.c.h.b16 %v417
    %v507 = vunpack.c.l.b16 %v418
    %v508 = vunpack.c.h.b16 %v418
    %v509 = vunpack.c.l.b16 %v419
    %v510 = vunpack.c.h.b16 %v419
    %v511 = vunpack.c.l.b16 %v420
    %v512 = vunpack.c.h.b16 %v420
    %v513 = vunpack.c.l.b16 %v421
    %v514 = vunpack.c.h.b16 %v421
    %v515 = vunpack.c.l.b16 %v422
    %v516 = vunpack.c.h.b16 %v422
    %v517 = vunpack.c.l.b16 %v423
    %v518 = vunpack.c.h.b16 %v423
    %v519 = vunpack.c.l.b16 %v424
    %v520 = vunpack.c.h.b16 %v424
    %v521 = vpack.c.b16 %v459, %v457
    %v522 = vpack.c.b16 %v460, %v458
    %v523 = vpack.c.b16 %v463, %v461
    %v524 = vpack.c.b16 %v464, %v462
    %v525 = vpack.c.b16 %v467, %v465
    %v526 = vpack.c.b16 %v468, %v466
    %v527 = vpack.c.b16 %v471, %v469
    %v528 = vpack.c.b16 %v472, %v470
    %v529 = vpack.c.b16 %v475, %v473
    %v530 = vpack.c.b16 %v476, %v474
    %v531 = vpack.c.b16 %v479, %v477
    %v532 = vpack.c.b16 %v480, %v478
    %v533 = vpack.c.b16 %v483, %v481
    %v534 = vpack.c.b16 %v484, %v482
    %v535 = vpack.c.b16 %v487, %v485
    %v536 = vpack.c.b16 %v488, %v486
    %v537 = vpack.c.b16 %v491, %v489
    %v538 = vpack.c.b16 %v492, %v490
    %v539 = vpack.c.b16 %v495, %v493
    %v540 = vpack.c.b16 %v496, %v494
    %v541 = vpack.c.b16 %v499, %v497
    %v542 = vpack.c.b16 %v500, %v498
    %v543 = vpack.c.b16 %v503, %v501
    %v544 = vpack.c.b16 %v504, %v502
    %v545 = vpack.c.b16 %v507, %v505
    %v546 = vpack.c.b16 %v508, %v506
    %v547 = vpack.c.b16 %v511, %v509
    %v548 = vpack.c.b16 %v512, %v510
    %v549 = vpack.c.b16 %v515, %v513
    %v550 = vpack.c.b16 %v516, %v514
    %v551 = vpack.c.b16 %v519, %v517
    %v552 = vpack.c.b16 %v520, %v518
    %585 = vmatprep.subr.bf16.mxu0 0
    %586 = vmatpush1.bf16.msra.mxu0 %v377
    %587 = vmatprep.subr.bf16.mxu0 0
    %588 = vmatpush1.bf16.msra.mxu0 %v378
    %589 = vmatprep.subr.bf16.mxu0 0
    %590 = vmatpush1.bf16.msra.mxu0 %v379
    %591 = vmatprep.subr.bf16.mxu0 0
    %592 = vmatpush1.bf16.msra.mxu0 %v380
    %593 = vmatprep.subr.bf16.mxu0 0
    %594 = vmatpush1.bf16.msra.mxu0 %v381
    %595 = vmatprep.subr.bf16.mxu0 0
    %596 = vmatpush1.bf16.msra.mxu0 %v382
    %597 = vmatprep.subr.bf16.mxu0 0
    %598 = vmatpush1.bf16.msra.mxu0 %v383
    %599 = vmatprep.subr.bf16.mxu0 0
    %600 = vmatpush1.bf16.msra.mxu0 %v384
    %601 = vmatprep.subr.bf16.mxu0 0
    %602 = vmatpush1.bf16.msra.mxu0 %v385
    %603 = vmatprep.subr.bf16.mxu0 0
    %604 = vmatpush1.bf16.msra.mxu0 %v386
    %605 = vmatprep.subr.bf16.mxu0 0
    %606 = vmatpush1.bf16.msra.mxu0 %v387
    %607 = vmatprep.subr.bf16.mxu0 0
    %608 = vmatpush1.bf16.msra.mxu0 %v388
    %609 = vmatprep.subr.bf16.mxu0 0
    %610 = vmatpush1.bf16.msra.mxu0 %v389
    %611 = vmatprep.subr.bf16.mxu0 0
    %612 = vmatpush1.bf16.msra.mxu0 %v390
    %613 = vmatprep.subr.bf16.mxu0 0
    %614 = vmatpush1.bf16.msra.mxu0 %v391
    %615 = vmatprep.subr.bf16.mxu0 0
    %616 = vmatpush1.bf16.msra.mxu0 %v392
    %617 = vmatprep.mubr.bf16.mxu0 %v522
    %618 = vmatmul.mubr.bf16.gmra.mrb[0].mxu0 %v521
    %v619 = vpop.f32.mrb[0].mxu0
    %v620 = vadd.f32 0.0, %v619
    %v621 = vpop.f32.mrb[0].mxu0
    %v622 = vpop.f32.mrb[0].mxu0
    %v623 = vadd.f32 0.0, %v622
    %v624 = vpop.f32.mrb[0].mxu0
    %625 = vmatprep.mubr.bf16.mxu0 %v524
    %626 = vmatmul.mubr.bf16.gmra.mrb[0].mxu0 %v523
    %v627 = vpop.f32.mrb[0].mxu0
    %v628 = vadd.f32 0.0, %v627
    %v629 = vpop.f32.mrb[0].mxu0
    %v630 = vpop.f32.mrb[0].mxu0
    %v631 = vadd.f32 0.0, %v630
    %v632 = vpop.f32.mrb[0].mxu0
    %633 = vmatprep.mubr.bf16.mxu0 %v526
    %634 = vmatmul.mubr.bf16.gmra.mrb[0].mxu0 %v525
    %v635 = vpop.f32.mrb[0].mxu0
    %v636 = vadd.f32 0.0, %v635
    %v637 = vpop.f32.mrb[0].mxu0
    %v638 = vpop.f32.mrb[0].mxu0
    %v639 = vadd.f32 0.0, %v638
    %v640 = vpop.f32.mrb[0].mxu0
    %641 = vmatprep.mubr.bf16.mxu0 %v528
    %642 = vmatmul.mubr.bf16.gmra.mrb[0].mxu0 %v527
    %v643 = vpop.f32.mrb[0].mxu0
    %v644 = vadd.f32 0.0, %v643
    %v645 = vpop.f32.mrb[0].mxu0
    %v646 = vpop.f32.mrb[0].mxu0
    %v647 = vadd.f32 0.0, %v646
    %v648 = vpop.f32.mrb[0].mxu0
    %649 = vmatprep.mubr.bf16.mxu0 %v530
    %650 = vmatmul.mubr.bf16.gmra.mrb[0].mxu0 %v529
    %v651 = vpop.f32.mrb[0].mxu0
    %v652 = vadd.f32 0.0, %v651
    %v653 = vpop.f32.mrb[0].mxu0
    %v654 = vpop.f32.mrb[0].mxu0
    %v655 = vadd.f32 0.0, %v654
    %v656 = vpop.f32.mrb[0].mxu0
    %657 = vmatprep.mubr.bf16.mxu0 %v532
    %658 = vmatmul.mubr.bf16.gmra.mrb[0].mxu0 %v531
    %v659 = vpop.f32.mrb[0].mxu0
    %v660 = vadd.f32 0.0, %v659
    %v661 = vpop.f32.mrb[0].mxu0
    %v662 = vpop.f32.mrb[0].mxu0
    %v663 = vadd.f32 0.0, %v662
    %v664 = vpop.f32.mrb[0].mxu0
    %665 = vmatprep.mubr.bf16.mxu0 %v534
    %666 = vmatmul.mubr.bf16.gmra.mrb[0].mxu0 %v533
    %v667 = vpop.f32.mrb[0].mxu0
    %v668 = vadd.f32 0.0, %v667
    %v669 = vpop.f32.mrb[0].mxu0
    %v670 = vpop.f32.mrb[0].mxu0
    %v671 = vadd.f32 0.0, %v670
    %v672 = vpop.f32.mrb[0].mxu0
    %673 = vmatprep.mubr.bf16.mxu0 %v536
    %674 = vmatmul.mubr.bf16.gmra.mrb[0].mxu0 %v535
    %v675 = vpop.f32.mrb[0].mxu0
    %v676 = vadd.f32 0.0, %v675
    %v677 = vpop.f32.mrb[0].mxu0
    %v678 = vpop.f32.mrb[0].mxu0
    %v679 = vadd.f32 0.0, %v678
    %v680 = vpop.f32.mrb[0].mxu0
    %681 = vmatprep.mubr.bf16.mxu0 %v538
    %682 = vmatmul.mubr.bf16.gmra.mrb[0].mxu0 %v537
    %v683 = vpop.f32.mrb[0].mxu0
    %v684 = vadd.f32 0.0, %v683
    %v685 = vpop.f32.mrb[0].mxu0
    %v686 = vpop.f32.mrb[0].mxu0
    %v687 = vadd.f32 0.0, %v686
    %v688 = vpop.f32.mrb[0].mxu0
    %689 = vmatprep.mubr.bf16.mxu0 %v540
    %690 = vmatmul.mubr.bf16.gmra.mrb[0].mxu0 %v539
    %v691 = vpop.f32.mrb[0].mxu0
    %v692 = vadd.f32 0.0, %v691
    %v693 = vpop.f32.mrb[0].mxu0
    %v694 = vpop.f32.mrb[0].mxu0
    %v695 = vadd.f32 0.0, %v694
    %v696 = vpop.f32.mrb[0].mxu0
    %697 = vmatprep.mubr.bf16.mxu0 %v542
    %698 = vmatmul.mubr.bf16.gmra.mrb[0].mxu0 %v541
    %v699 = vpop.f32.mrb[0].mxu0
    %v700 = vadd.f32 0.0, %v699
    %v701 = vpop.f32.mrb[0].mxu0
    %v702 = vpop.f32.mrb[0].mxu0
    %v703 = vadd.f32 0.0, %v702
    %v704 = vpop.f32.mrb[0].mxu0
    %705 = vmatprep.mubr.bf16.mxu0 %v544
    %706 = vmatmul.mubr.bf16.gmra.mrb[0].mxu0 %v543
    %v707 = vpop.f32.mrb[0].mxu0
    %v708 = vadd.f32 0.0, %v707
    %v709 = vpop.f32.mrb[0].mxu0
    %v710 = vpop.f32.mrb[0].mxu0
    %v711 = vadd.f32 0.0, %v710
    %v712 = vpop.f32.mrb[0].mxu0
    %713 = vmatprep.mubr.bf16.mxu0 %v546
    %714 = vmatmul.mubr.bf16.gmra.mrb[0].mxu0 %v545
    %v715 = vpop.f32.mrb[0].mxu0
    %v716 = vadd.f32 0.0, %v715
    %v717 = vpop.f32.mrb[0].mxu0
    %v718 = vpop.f32.mrb[0].mxu0
    %v719 = vadd.f32 0.0, %v718
    %v720 = vpop.f32.mrb[0].mxu0
    %721 = vmatprep.mubr.bf16.mxu0 %v548
    %722 = vmatmul.mubr.bf16.gmra.mrb[0].mxu0 %v547
    %v723 = vpop.f32.mrb[0].mxu0
    %v724 = vadd.f32 0.0, %v723
    %v725 = vpop.f32.mrb[0].mxu0
    %v726 = vpop.f32.mrb[0].mxu0
    %v727 = vadd.f32 0.0, %v726
    %v728 = vpop.f32.mrb[0].mxu0
    %729 = vmatprep.mubr.bf16.mxu0 %v550
    %730 = vmatmul.mubr.bf16.gmra.mrb[0].mxu0 %v549
    %v731 = vpop.f32.mrb[0].mxu0
    %v732 = vadd.f32 0.0, %v731
    %v733 = vpop.f32.mrb[0].mxu0
    %v734 = vpop.f32.mrb[0].mxu0
    %v735 = vadd.f32 0.0, %v734
    %v736 = vpop.f32.mrb[0].mxu0
    %737 = vmatprep.mubr.bf16.mxu0 %v552
    %738 = vmatmul.mubr.bf16.gmra.mrb[0].mxu0 %v551
    %v739 = vpop.f32.mrb[0].mxu0
    %v740 = vadd.f32 0.0, %v739
    %v741 = vpop.f32.mrb[0].mxu0
    %v742 = vpop.f32.mrb[0].mxu0
    %v743 = vadd.f32 0.0, %v742
    %v744 = vpop.f32.mrb[0].mxu0
    %745 = vdwg.mxu0
    %v746 = vpack.c.bf16 %v623, %v620
    %v747 = vpack.c.bf16 %v631, %v628
    %v748 = vpack.c.bf16 %v639, %v636
    %v749 = vpack.c.bf16 %v647, %v644
    %v750 = vpack.c.bf16 %v655, %v652
    %v751 = vpack.c.bf16 %v663, %v660
    %v752 = vpack.c.bf16 %v671, %v668
    %v753 = vpack.c.bf16 %v679, %v676
    %v754 = vpack.c.bf16 %v687, %v684
    %v755 = vpack.c.bf16 %v695, %v692
    %v756 = vpack.c.bf16 %v703, %v700
    %v757 = vpack.c.bf16 %v711, %v708
    %v758 = vpack.c.bf16 %v719, %v716
    %v759 = vpack.c.bf16 %v727, %v724
    %v760 = vpack.c.bf16 %v735, %v732
    %v761 = vpack.c.bf16 %v743, %v740
    %v762 = vld [vmem:[%s3] sm:$0x1]
    %v764 = vlaneseq
    %v765 = vshrl.u32 %v764, 7
    %v766 = vsub.s32 0, %v765
    %v767 = vrot.slane %v762, %v766
    %769 = vmatprep.subr.bf16.mxu0 0
    %770 = vmatpush1.bf16.msra.mxu0 %v746
    %771 = vmatprep.subr.bf16.mxu0 0
    %772 = vmatpush1.bf16.msra.mxu0 %v747
    %773 = vmatprep.subr.bf16.mxu0 0
    %774 = vmatpush1.bf16.msra.mxu0 %v748
    %775 = vmatprep.subr.bf16.mxu0 0
    %776 = vmatpush1.bf16.msra.mxu0 %v749
    %777 = vmatprep.subr.bf16.mxu0 0
    %778 = vmatpush1.bf16.msra.mxu0 %v750
    %779 = vmatprep.subr.bf16.mxu0 0
    %780 = vmatpush1.bf16.msra.mxu0 %v751
    %781 = vmatprep.subr.bf16.mxu0 0
    %782 = vmatpush1.bf16.msra.mxu0 %v752
    %783 = vmatprep.subr.bf16.mxu0 0
    %784 = vmatpush1.bf16.msra.mxu0 %v753
    %785 = vmatprep.subr.bf16.mxu0 0
    %786 = vmatpush1.bf16.msra.mxu0 %v754
    %787 = vmatprep.subr.bf16.mxu0 0
    %788 = vmatpush1.bf16.msra.mxu0 %v755
    %789 = vmatprep.subr.bf16.mxu0 0
    %790 = vmatpush1.bf16.msra.mxu0 %v756
    %791 = vmatprep.subr.bf16.mxu0 0
    %792 = vmatpush1.bf16.msra.mxu0 %v757
    %793 = vmatprep.subr.bf16.mxu0 0
    %794 = vmatpush1.bf16.msra.mxu0 %v758
    %795 = vmatprep.subr.bf16.mxu0 0
    %796 = vmatpush1.bf16.msra.mxu0 %v759
    %797 = vmatprep.subr.bf16.mxu0 0
    %798 = vmatpush1.bf16.msra.mxu0 %v760
    %799 = vmatprep.subr.bf16.mxu0 0
    %800 = vmatpush1.bf16.msra.mxu0 %v761
    %801 = vmatprep.mubr.bf16.mxu0 %v522
    %802 = vmatmul.mubr.bf16.gmra.mrb[0].mxu0 %v521
    %v803 = vpop.f32.mrb[0].mxu0
    %v804 = vadd.f32 %v767, %v803
    %v805 = vpop.f32.mrb[0].mxu0
    %v806 = vpop.f32.mrb[0].mxu0
    %v807 = vadd.f32 %v767, %v806
    %v808 = vpop.f32.mrb[0].mxu0
    %809 = vmatprep.mubr.bf16.mxu0 %v524
    %810 = vmatmul.mubr.bf16.gmra.mrb[0].mxu0 %v523
    %v811 = vpop.f32.mrb[0].mxu0
    %v812 = vadd.f32 %v767, %v811
    %v813 = vpop.f32.mrb[0].mxu0
    %v814 = vpop.f32.mrb[0].mxu0
    %v815 = vadd.f32 %v767, %v814
    %v816 = vpop.f32.mrb[0].mxu0
    %817 = vmatprep.mubr.bf16.mxu0 %v526
    %818 = vmatmul.mubr.bf16.gmra.mrb[0].mxu0 %v525
    %v819 = vpop.f32.mrb[0].mxu0
    %v820 = vadd.f32 %v767, %v819
    %v821 = vpop.f32.mrb[0].mxu0
    %v822 = vpop.f32.mrb[0].mxu0
    %v823 = vadd.f32 %v767, %v822
    %v824 = vpop.f32.mrb[0].mxu0
    %825 = vmatprep.mubr.bf16.mxu0 %v528
    %826 = vmatmul.mubr.bf16.gmra.mrb[0].mxu0 %v527
    %v827 = vpop.f32.mrb[0].mxu0
    %v828 = vadd.f32 %v767, %v827
    %v829 = vpop.f32.mrb[0].mxu0
    %v830 = vpop.f32.mrb[0].mxu0
    %v831 = vadd.f32 %v767, %v830
    %v832 = vpop.f32.mrb[0].mxu0
    %833 = vmatprep.mubr.bf16.mxu0 %v530
    %834 = vmatmul.mubr.bf16.gmra.mrb[0].mxu0 %v529
    %v835 = vpop.f32.mrb[0].mxu0
    %v836 = vadd.f32 %v767, %v835
    %v837 = vpop.f32.mrb[0].mxu0
    %v838 = vpop.f32.mrb[0].mxu0
    %v839 = vadd.f32 %v767, %v838
    %v840 = vpop.f32.mrb[0].mxu0
    %841 = vmatprep.mubr.bf16.mxu0 %v532
    %842 = vmatmul.mubr.bf16.gmra.mrb[0].mxu0 %v531
    %v843 = vpop.f32.mrb[0].mxu0
    %v844 = vadd.f32 %v767, %v843
    %v845 = vpop.f32.mrb[0].mxu0
    %v846 = vpop.f32.mrb[0].mxu0
    %v847 = vadd.f32 %v767, %v846
    %v848 = vpop.f32.mrb[0].mxu0
    %849 = vmatprep.mubr.bf16.mxu0 %v534
    %850 = vmatmul.mubr.bf16.gmra.mrb[0].mxu0 %v533
    %v851 = vpop.f32.mrb[0].mxu0
    %v852 = vadd.f32 %v767, %v851
    %v853 = vpop.f32.mrb[0].mxu0
    %v854 = vpop.f32.mrb[0].mxu0
    %v855 = vadd.f32 %v767, %v854
    %v856 = vpop.f32.mrb[0].mxu0
    %857 = vmatprep.mubr.bf16.mxu0 %v536
    %858 = vmatmul.mubr.bf16.gmra.mrb[0].mxu0 %v535
    %v859 = vpop.f32.mrb[0].mxu0
    %v860 = vadd.f32 %v767, %v859
    %v861 = vpop.f32.mrb[0].mxu0
    %v862 = vpop.f32.mrb[0].mxu0
    %v863 = vadd.f32 %v767, %v862
    %v864 = vpop.f32.mrb[0].mxu0
    %865 = vmatprep.mubr.bf16.mxu0 %v538
    %866 = vmatmul.mubr.bf16.gmra.mrb[0].mxu0 %v537
    %v867 = vpop.f32.mrb[0].mxu0
    %v868 = vadd.f32 %v767, %v867
    %v869 = vpop.f32.mrb[0].mxu0
    %v870 = vpop.f32.mrb[0].mxu0
    %v871 = vadd.f32 %v767, %v870
    %v872 = vpop.f32.mrb[0].mxu0
    %873 = vmatprep.mubr.bf16.mxu0 %v540
    %874 = vmatmul.mubr.bf16.gmra.mrb[0].mxu0 %v539
    %v875 = vpop.f32.mrb[0].mxu0
    %v876 = vadd.f32 %v767, %v875
    %v877 = vpop.f32.mrb[0].mxu0
    %v878 = vpop.f32.mrb[0].mxu0
    %v879 = vadd.f32 %v767, %v878
    %v880 = vpop.f32.mrb[0].mxu0
    %881 = vmatprep.mubr.bf16.mxu0 %v542
    %882 = vmatmul.mubr.bf16.gmra.mrb[0].mxu0 %v541
    %v883 = vpop.f32.mrb[0].mxu0
    %v884 = vadd.f32 %v767, %v883
    %v885 = vpop.f32.mrb[0].mxu0
    %v886 = vpop.f32.mrb[0].mxu0
    %v887 = vadd.f32 %v767, %v886
    %v888 = vpop.f32.mrb[0].mxu0
    %889 = vmatprep.mubr.bf16.mxu0 %v544
    %890 = vmatmul.mubr.bf16.gmra.mrb[0].mxu0 %v543
    %v891 = vpop.f32.mrb[0].mxu0
    %v892 = vadd.f32 %v767, %v891
    %v893 = vpop.f32.mrb[0].mxu0
    %v894 = vpop.f32.mrb[0].mxu0
    %v895 = vadd.f32 %v767, %v894
    %v896 = vpop.f32.mrb[0].mxu0
    %897 = vmatprep.mubr.bf16.mxu0 %v546
    %898 = vmatmul.mubr.bf16.gmra.mrb[0].mxu0 %v545
    %v899 = vpop.f32.mrb[0].mxu0
    %v900 = vadd.f32 %v767, %v899
    %v901 = vpop.f32.mrb[0].mxu0
    %v902 = vpop.f32.mrb[0].mxu0
    %v903 = vadd.f32 %v767, %v902
    %v904 = vpop.f32.mrb[0].mxu0
    %905 = vmatprep.mubr.bf16.mxu0 %v548
    %906 = vmatmul.mubr.bf16.gmra.mrb[0].mxu0 %v547
    %v907 = vpop.f32.mrb[0].mxu0
    %v908 = vadd.f32 %v767, %v907
    %v909 = vpop.f32.mrb[0].mxu0
    %v910 = vpop.f32.mrb[0].mxu0
    %v911 = vadd.f32 %v767, %v910
    %v912 = vpop.f32.mrb[0].mxu0
    %913 = vmatprep.mubr.bf16.mxu0 %v550
    %914 = vmatmul.mubr.bf16.gmra.mrb[0].mxu0 %v549
    %v915 = vpop.f32.mrb[0].mxu0
    %v916 = vadd.f32 %v767, %v915
    %v917 = vpop.f32.mrb[0].mxu0
    %v918 = vpop.f32.mrb[0].mxu0
    %v919 = vadd.f32 %v767, %v918
    %v920 = vpop.f32.mrb[0].mxu0
    %921 = vmatprep.mubr.bf16.mxu0 %v552
    %922 = vmatmul.mubr.bf16.gmra.mrb[0].mxu0 %v551
    %v923 = vpop.f32.mrb[0].mxu0
    %v924 = vadd.f32 %v767, %v923
    %v925 = vpop.f32.mrb[0].mxu0
    %v926 = vpop.f32.mrb[0].mxu0
    %v927 = vadd.f32 %v767, %v926
    %v928 = vpop.f32.mrb[0].mxu0
    %929 = vdwg.mxu0
    %v930 = vmax.f32 %v804, 0.0
    %v931 = vmax.f32 %v807, 0.0
    %v932 = vmax.f32 %v812, 0.0
    %v933 = vmax.f32 %v815, 0.0
    %v934 = vmax.f32 %v820, 0.0
    %v935 = vmax.f32 %v823, 0.0
    %v936 = vmax.f32 %v828, 0.0
    %v937 = vmax.f32 %v831, 0.0
    %v938 = vmax.f32 %v836, 0.0
    %v939 = vmax.f32 %v839, 0.0
    %v940 = vmax.f32 %v844, 0.0
    %v941 = vmax.f32 %v847, 0.0
    %v942 = vmax.f32 %v852, 0.0
    %v943 = vmax.f32 %v855, 0.0
    %v944 = vmax.f32 %v860, 0.0
    %v945 = vmax.f32 %v863, 0.0
    %v946 = vmax.f32 %v868, 0.0
    %v947 = vmax.f32 %v871, 0.0
    %v948 = vmax.f32 %v876, 0.0
    %v949 = vmax.f32 %v879, 0.0
    %v950 = vmax.f32 %v884, 0.0
    %v951 = vmax.f32 %v887, 0.0
    %v952 = vmax.f32 %v892, 0.0
    %v953 = vmax.f32 %v895, 0.0
    %v954 = vmax.f32 %v900, 0.0
    %v955 = vmax.f32 %v903, 0.0
    %v956 = vmax.f32 %v908, 0.0
    %v957 = vmax.f32 %v911, 0.0
    %v958 = vmax.f32 %v916, 0.0
    %v959 = vmax.f32 %v919, 0.0
    %v960 = vmax.f32 %v924, 0.0
    %v961 = vmax.f32 %v927, 0.0
    %v962 = vpack.c.bf16 %v931, %v930
    %v963 = vpack.c.bf16 %v933, %v932
    %v964 = vpack.c.bf16 %v935, %v934
    %v965 = vpack.c.bf16 %v937, %v936
    %v966 = vpack.c.bf16 %v939, %v938
    %v967 = vpack.c.bf16 %v941, %v940
    %v968 = vpack.c.bf16 %v943, %v942
    %v969 = vpack.c.bf16 %v945, %v944
    %v970 = vpack.c.bf16 %v947, %v946
    %v971 = vpack.c.bf16 %v949, %v948
    %v972 = vpack.c.bf16 %v951, %v950
    %v973 = vpack.c.bf16 %v953, %v952
    %v974 = vpack.c.bf16 %v955, %v954
    %v975 = vpack.c.bf16 %v957, %v956
    %v976 = vpack.c.bf16 %v959, %v958
    %v977 = vpack.c.bf16 %v961, %v960
    %v978 = vld [vmem:[%s4] sm:$0xf]
    %v979 = vld [vmem:[%s4 + $0x4] sm:$0xf]
    %v980 = vld [vmem:[%s4 + $0x8] sm:$0xf]
    %v981 = vld [vmem:[%s4 + $0xc] sm:$0xf]
    %v982 = vld [vmem:[%s5] sm:$0x1]
    %v984 = vlaneseq
    %v985 = vshrl.u32 %v984, 7
    %v986 = vsub.s32 0, %v985
    %v987 = vrot.slane %v982, %v986
    %v993 = vunpack.c.l.b16 %v978
    %v994 = vunpack.c.l.b16 %v979
    %v995 = vunpack.c.l.b16 %v980
    %v996 = vunpack.c.l.b16 %v981
    %v997 = vpack.c.b16 %v994, %v993
    %v998 = vpack.c.b16 %v996, %v995
    %v1002 = vsel %vm167, %v962, 0
    %v1005 = vsel %vm167, %v963, 0
    %v1008 = vsel %vm167, %v964, 0
    %v1011 = vsel %vm167, %v965, 0
    %v1014 = vsel %vm167, %v966, 0
    %v1017 = vsel %vm167, %v967, 0
    %v1020 = vsel %vm167, %v968, 0
    %v1023 = vsel %vm167, %v969, 0
    %v1026 = vsel %vm167, %v970, 0
    %v1029 = vsel %vm167, %v971, 0
    %v1032 = vsel %vm167, %v972, 0
    %v1035 = vsel %vm167, %v973, 0
    %v1038 = vsel %vm167, %v974, 0
    %v1041 = vsel %vm167, %v975, 0
    %v1044 = vsel %vm167, %v976, 0
    %v1047 = vsel %vm167, %v977, 0
    %1049 = vmatprep.subr.bf16.mxu0 0
    %1050 = vmatpush1.bf16.msra.mxu0 %v997
    %1051 = vmatprep.subr.bf16.mxu0 0
    %1052 = vmatpush1.bf16.msra.mxu0 %v998
    %1053 = vmatprep.subr.bf16.mxu0 0
    %1054 = vmatpush1.bf16.msra.mxu0 0
    %1055 = vmatprep.subr.bf16.mxu0 0
    %1056 = vmatpush1.bf16.msra.mxu0 0
    %1057 = vmatprep.subr.bf16.mxu0 0
    %1058 = vmatpush1.bf16.msra.mxu0 0
    %1059 = vmatprep.subr.bf16.mxu0 0
    %1060 = vmatpush1.bf16.msra.mxu0 0
    %1061 = vmatprep.subr.bf16.mxu0 0
    %1062 = vmatpush1.bf16.msra.mxu0 0
    %1063 = vmatprep.subr.bf16.mxu0 0
    %1064 = vmatpush1.bf16.msra.mxu0 0
    %1065 = vmatprep.subr.bf16.mxu0 0
    %1066 = vmatpush1.bf16.msra.mxu0 0
    %1067 = vmatprep.subr.bf16.mxu0 0
    %1068 = vmatpush1.bf16.msra.mxu0 0
    %1069 = vmatprep.subr.bf16.mxu0 0
    %1070 = vmatpush1.bf16.msra.mxu0 0
    %1071 = vmatprep.subr.bf16.mxu0 0
    %1072 = vmatpush1.bf16.msra.mxu0 0
    %1073 = vmatprep.subr.bf16.mxu0 0
    %1074 = vmatpush1.bf16.msra.mxu0 0
    %1075 = vmatprep.subr.bf16.mxu0 0
    %1076 = vmatpush1.bf16.msra.mxu0 0
    %1077 = vmatprep.subr.bf16.mxu0 0
    %1078 = vmatpush1.bf16.msra.mxu0 0
    %1079 = vmatprep.subr.bf16.mxu0 0
    %1080 = vmatpush1.bf16.msra.mxu0 0
    %1081 = vmatprep.mubr.bf16.mxu0 0
    %1082 = vmatmul.mubr.bf16.gmra.mrb[0].mxu0 %v1002
    %v1083 = vpop.f32.mrb[0].mxu0
    %v1084 = vadd.f32 %v987, %v1083
    %v1085 = vpop.f32.mrb[0].mxu0
    %v1086 = vpop.f32.mrb[0].mxu0
    %v1087 = vadd.f32 %v987, %v1086
    %v1088 = vpop.f32.mrb[0].mxu0
    %1089 = vmatprep.mubr.bf16.mxu0 0
    %1090 = vmatmul.mubr.bf16.gmra.mrb[0].mxu0 %v1005
    %v1091 = vpop.f32.mrb[0].mxu0
    %v1092 = vadd.f32 %v987, %v1091
    %v1093 = vpop.f32.mrb[0].mxu0
    %v1094 = vpop.f32.mrb[0].mxu0
    %v1095 = vadd.f32 %v987, %v1094
    %v1096 = vpop.f32.mrb[0].mxu0
    %1097 = vmatprep.mubr.bf16.mxu0 0
    %1098 = vmatmul.mubr.bf16.gmra.mrb[0].mxu0 %v1008
    %v1099 = vpop.f32.mrb[0].mxu0
    %v1100 = vadd.f32 %v987, %v1099
    %v1101 = vpop.f32.mrb[0].mxu0
    %v1102 = vpop.f32.mrb[0].mxu0
    %v1103 = vadd.f32 %v987, %v1102
    %v1104 = vpop.f32.mrb[0].mxu0
    %1105 = vmatprep.mubr.bf16.mxu0 0
    %1106 = vmatmul.mubr.bf16.gmra.mrb[0].mxu0 %v1011
    %v1107 = vpop.f32.mrb[0].mxu0
    %v1108 = vadd.f32 %v987, %v1107
    %v1109 = vpop.f32.mrb[0].mxu0
    %v1110 = vpop.f32.mrb[0].mxu0
    %v1111 = vadd.f32 %v987, %v1110
    %v1112 = vpop.f32.mrb[0].mxu0
    %1113 = vmatprep.mubr.bf16.mxu0 0
    %1114 = vmatmul.mubr.bf16.gmra.mrb[0].mxu0 %v1014
    %v1115 = vpop.f32.mrb[0].mxu0
    %v1116 = vadd.f32 %v987, %v1115
    %v1117 = vpop.f32.mrb[0].mxu0
    %v1118 = vpop.f32.mrb[0].mxu0
    %v1119 = vadd.f32 %v987, %v1118
    %v1120 = vpop.f32.mrb[0].mxu0
    %1121 = vmatprep.mubr.bf16.mxu0 0
    %1122 = vmatmul.mubr.bf16.gmra.mrb[0].mxu0 %v1017
    %v1123 = vpop.f32.mrb[0].mxu0
    %v1124 = vadd.f32 %v987, %v1123
    %v1125 = vpop.f32.mrb[0].mxu0
    %v1126 = vpop.f32.mrb[0].mxu0
    %v1127 = vadd.f32 %v987, %v1126
    %v1128 = vpop.f32.mrb[0].mxu0
    %1129 = vmatprep.mubr.bf16.mxu0 0
    %1130 = vmatmul.mubr.bf16.gmra.mrb[0].mxu0 %v1020
    %v1131 = vpop.f32.mrb[0].mxu0
    %v1132 = vadd.f32 %v987, %v1131
    %v1133 = vpop.f32.mrb[0].mxu0
    %v1134 = vpop.f32.mrb[0].mxu0
    %v1135 = vadd.f32 %v987, %v1134
    %v1136 = vpop.f32.mrb[0].mxu0
    %1137 = vmatprep.mubr.bf16.mxu0 0
    %1138 = vmatmul.mubr.bf16.gmra.mrb[0].mxu0 %v1023
    %v1139 = vpop.f32.mrb[0].mxu0
    %v1140 = vadd.f32 %v987, %v1139
    %v1141 = vpop.f32.mrb[0].mxu0
    %v1142 = vpop.f32.mrb[0].mxu0
    %v1143 = vadd.f32 %v987, %v1142
    %v1144 = vpop.f32.mrb[0].mxu0
    %1145 = vmatprep.mubr.bf16.mxu0 0
    %1146 = vmatmul.mubr.bf16.gmra.mrb[0].mxu0 %v1026
    %v1147 = vpop.f32.mrb[0].mxu0
    %v1148 = vadd.f32 %v987, %v1147
    %v1149 = vpop.f32.mrb[0].mxu0
    %v1150 = vpop.f32.mrb[0].mxu0
    %v1151 = vadd.f32 %v987, %v1150
    %v1152 = vpop.f32.mrb[0].mxu0
    %1153 = vmatprep.mubr.bf16.mxu0 0
    %1154 = vmatmul.mubr.bf16.gmra.mrb[0].mxu0 %v1029
    %v1155 = vpop.f32.mrb[0].mxu0
    %v1156 = vadd.f32 %v987, %v1155
    %v1157 = vpop.f32.mrb[0].mxu0
    %v1158 = vpop.f32.mrb[0].mxu0
    %v1159 = vadd.f32 %v987, %v1158
    %v1160 = vpop.f32.mrb[0].mxu0
    %1161 = vmatprep.mubr.bf16.mxu0 0
    %1162 = vmatmul.mubr.bf16.gmra.mrb[0].mxu0 %v1032
    %v1163 = vpop.f32.mrb[0].mxu0
    %v1164 = vadd.f32 %v987, %v1163
    %v1165 = vpop.f32.mrb[0].mxu0
    %v1166 = vpop.f32.mrb[0].mxu0
    %v1167 = vadd.f32 %v987, %v1166
    %v1168 = vpop.f32.mrb[0].mxu0
    %1169 = vmatprep.mubr.bf16.mxu0 0
    %1170 = vmatmul.mubr.bf16.gmra.mrb[0].mxu0 %v1035
    %v1171 = vpop.f32.mrb[0].mxu0
    %v1172 = vadd.f32 %v987, %v1171
    %v1173 = vpop.f32.mrb[0].mxu0
    %v1174 = vpop.f32.mrb[0].mxu0
    %v1175 = vadd.f32 %v987, %v1174
    %v1176 = vpop.f32.mrb[0].mxu0
    %1177 = vmatprep.mubr.bf16.mxu0 0
    %1178 = vmatmul.mubr.bf16.gmra.mrb[0].mxu0 %v1038
    %v1179 = vpop.f32.mrb[0].mxu0
    %v1180 = vadd.f32 %v987, %v1179
    %v1181 = vpop.f32.mrb[0].mxu0
    %v1182 = vpop.f32.mrb[0].mxu0
    %v1183 = vadd.f32 %v987, %v1182
    %v1184 = vpop.f32.mrb[0].mxu0
    %1185 = vmatprep.mubr.bf16.mxu0 0
    %1186 = vmatmul.mubr.bf16.gmra.mrb[0].mxu0 %v1041
    %v1187 = vpop.f32.mrb[0].mxu0
    %v1188 = vadd.f32 %v987, %v1187
    %v1189 = vpop.f32.mrb[0].mxu0
    %v1190 = vpop.f32.mrb[0].mxu0
    %v1191 = vadd.f32 %v987, %v1190
    %v1192 = vpop.f32.mrb[0].mxu0
    %1193 = vmatprep.mubr.bf16.mxu0 0
    %1194 = vmatmul.mubr.bf16.gmra.mrb[0].mxu0 %v1044
    %v1195 = vpop.f32.mrb[0].mxu0
    %v1196 = vadd.f32 %v987, %v1195
    %v1197 = vpop.f32.mrb[0].mxu0
    %v1198 = vpop.f32.mrb[0].mxu0
    %v1199 = vadd.f32 %v987, %v1198
    %v1200 = vpop.f32.mrb[0].mxu0
    %1201 = vmatprep.mubr.bf16.mxu0 0
    %1202 = vmatmul.mubr.bf16.gmra.mrb[0].mxu0 %v1047
    %v1203 = vpop.f32.mrb[0].mxu0
    %v1204 = vadd.f32 %v987, %v1203
    %v1205 = vpop.f32.mrb[0].mxu0
    %v1206 = vpop.f32.mrb[0].mxu0
    %v1207 = vadd.f32 %v987, %v1206
    %v1208 = vpop.f32.mrb[0].mxu0
    %1209 = vdwg.mxu0
    %1210 = vst [vmem:[#allocation5] sm:$0xff] %v1084
    %1211 = vst [vmem:[#allocation5 + $0x8] sm:$0xff] %v1087
    %1212 = vst [vmem:[#allocation5 + $0x10] sm:$0xff] %v1092
    %1213 = vst [vmem:[#allocation5 + $0x18] sm:$0xff] %v1095
    %1214 = vst [vmem:[#allocation5 + $0x20] sm:$0xff] %v1100
    %1215 = vst [vmem:[#allocation5 + $0x28] sm:$0xff] %v1103
    %1216 = vst [vmem:[#allocation5 + $0x30] sm:$0xff] %v1108
    %1217 = vst [vmem:[#allocation5 + $0x38] sm:$0xff] %v1111
    %1218 = vst [vmem:[#allocation5 + $0x40] sm:$0xff] %v1116
    %1219 = vst [vmem:[#allocation5 + $0x48] sm:$0xff] %v1119
    %1220 = vst [vmem:[#allocation5 + $0x50] sm:$0xff] %v1124
    %1221 = vst [vmem:[#allocation5 + $0x58] sm:$0xff] %v1127
    %1222 = vst [vmem:[#allocation5 + $0x60] sm:$0xff] %v1132
    %1223 = vst [vmem:[#allocation5 + $0x68] sm:$0xff] %v1135
    %1224 = vst [vmem:[#allocation5 + $0x70] sm:$0xff] %v1140
    %1225 = vst [vmem:[#allocation5 + $0x78] sm:$0xff] %v1143
    %1226 = vst [vmem:[#allocation5 + $0x80] sm:$0xff] %v1148
    %1227 = vst [vmem:[#allocation5 + $0x88] sm:$0xff] %v1151
    %1228 = vst [vmem:[#allocation5 + $0x90] sm:$0xff] %v1156
    %1229 = vst [vmem:[#allocation5 + $0x98] sm:$0xff] %v1159
    %1230 = vst [vmem:[#allocation5 + $0xa0] sm:$0xff] %v1164
    %1231 = vst [vmem:[#allocation5 + $0xa8] sm:$0xff] %v1167
    %1232 = vst [vmem:[#allocation5 + $0xb0] sm:$0xff] %v1172
    %1233 = vst [vmem:[#allocation5 + $0xb8] sm:$0xff] %v1175
    %1234 = vst [vmem:[#allocation5 + $0xc0] sm:$0xff] %v1180
    %1235 = vst [vmem:[#allocation5 + $0xc8] sm:$0xff] %v1183
    %1236 = vst [vmem:[#allocation5 + $0xd0] sm:$0xff] %v1188
    %1237 = vst [vmem:[#allocation5 + $0xd8] sm:$0xff] %v1191
    %1238 = vst [vmem:[#allocation5 + $0xe0] sm:$0xff] %v1196
    %1239 = vst [vmem:[#allocation5 + $0xe8] sm:$0xff] %v1199
    %1240 = vst [vmem:[#allocation5 + $0xf0] sm:$0xff] %v1204
    %1241 = vst [vmem:[#allocation5 + $0xf8] sm:$0xff] %v1207
    // Predicated region
    $region30: #{tpu_custom_call.1} parent=1 // pred_check
      _
    $region31: #{tpu_custom_call.1} parent=1 // pred_check_branch
      %1243 = sbr.rel (0) target = $region33
    $region32: #{tpu_custom_call.1} parent=1 // pred_region
      %s1245 = ssub.s32 4096, 4096
      %1246 = vsyncadd [#allocation4], %s1245
      %s1247 = sshll.u32 [#allocation5], 4
      %s1248 = int_to_ptr.vmem [resolvable:$true] %s1247
      %1253 = dma.vmem_to_hbm [thread:$0]  %s1248, 4096, %s6, [#allocation4], 128, 128, 8
    $region33: #{tpu_custom_call.1} parent=1 // pred_fallthru
      _
    // Predicated region
    $region34: #{tpu_custom_call.1} parent=1 // pred_check
      _
    $region35: #{tpu_custom_call.1} parent=1 // pred_check_branch
      %1255 = sbr.rel (0) target = $region37
    $region36: #{tpu_custom_call.1} parent=1 // pred_region
      %1256 = dma.done [#allocation4], 4096
    $region37: #{tpu_custom_call.1} parent=1 // pred_fallthru
      _
    %1257 = vsyncpa [#allocation3], 1
    %1258 = vsyncpa [#allocation4], 1

</llo_original>
